<compile_context>
chip_gen: v6e
topology: v6e:2x2x1
jax: 0.10.0
libtpu: 0.0.40
codegen_flags: <defaults>
</compile_context>

<pallas_src>
import math

import jax
import jax.numpy as jnp
from jax.experimental import pallas as pl
from jax.experimental.pallas import tpu as pltpu


def _rope_kernel(x_ref, cos_ref, sin_ref, o_ref):
    """x_ref/o_ref: (TB, TS, D) blocks; cos_ref/sin_ref: (TS, D) blocks.

    cos_ref holds cos duplicated per pair; sin_ref holds sin with a (-, +)
    sign pattern, so
        out[..., 2i]   = x[..., 2i]   * cos[i] - x[..., 2i+1] * sin[i]
        out[..., 2i+1] = x[..., 2i+1] * cos[i] + x[..., 2i]   * sin[i]
    reduces to  out = x * cos_i + pair_swap(x) * sin_i.
    """
    x = x_ref[...].astype(jnp.float32)                 # (TB, TS, D)
    c = cos_ref[...].astype(jnp.float32)[None, :, :]   # (1, TS, D) broadcast over TB
    s = sin_ref[...].astype(jnp.float32)[None, :, :]
    d = x.shape[-1]

    # Pair swap (2i <-> 2i+1) along the lane axis, in-VMEM on the XLU
    # (free slot underneath the DMA on all generations).
    x_prev = pltpu.roll(x, shift=1, axis=2)        # x_prev[..., j] = x[..., j-1]
    x_next = pltpu.roll(x, shift=d - 1, axis=2)    # x_next[..., j] = x[..., j+1]
    lane = jax.lax.broadcasted_iota(jnp.int32, x.shape, 2)
    x_swap = jnp.where(lane % 2 == 0, x_next, x_prev)

    o_ref[...] = (x * c + x_swap * s).astype(o_ref.dtype)


def make_rope_tables(dim: int, max_seq_len: int = 1024, dtype=jnp.float32):
    """Pair-interleaved RoPE tables, equivalent to the PyTorch buffers.

    Returns (cos_i, sin_i), both (max_seq_len, dim):
        cos_i[:, 2i] = cos_i[:, 2i+1] = cos(pos * div_term[i])
        sin_i[:, 2i] = -sin(pos * div_term[i]);  sin_i[:, 2i+1] = +sin(...)
    Pass dtype = activation dtype (e.g. bf16) to halve table HBM traffic
    (note: bf16 tables loosen the achievable output tolerance).
    """
    assert dim % 2 == 0, "Dimension must be divisible by 2"
    position = jnp.arange(max_seq_len, dtype=jnp.float32)[:, None]        # (L, 1)
    div_term = jnp.exp(jnp.arange(0, dim, 2, dtype=jnp.float32)
                       * (-math.log(10000.0) / dim))                      # (D/2,)
    pos_emb = position * div_term                                         # (L, D/2)
    cos = jnp.cos(pos_emb)
    sin = jnp.sin(pos_emb)
    cos_i = jnp.repeat(cos, 2, axis=1)                                    # (L, D)
    sin_i = jnp.stack([-sin, sin], axis=-1).reshape(max_seq_len, dim)     # (L, D)
    return cos_i.astype(dtype), sin_i.astype(dtype)


def _vmem_capacity_bytes() -> int:
    """Physical VMEM of this TPU generation (fallback = v7x's 64 MiB, the
    smallest of v5e/v6e/v7x, so a wrong guess can only be conservative)."""
    default = 64 * 1024 * 1024
    try:
        info = pltpu.get_tpu_info()
        return int(getattr(info, "vmem_capacity_bytes", default))
    except Exception:
        return default


def _pick_tiles(B: int, S: int, D: int, x_itemsize: int, table_itemsize: int,
                vmem_cap: int):
    """Choose (TB, TS) so each grid step moves a few MiB of x while the
    double-buffered working set stays well inside this generation's VMEM."""
    budget = max(vmem_cap // 3, 4 * 1024 * 1024)
    # Per (batch, seq)-row of x: in + out blocks (2 buffers each) + ~f32 temps.
    x_row_bytes = (4 * x_itemsize + 24) * D
    # Per seq-row of the tables: cos + sin (2 buffers each) + f32 upcast.
    tab_row_bytes = (4 * table_itemsize + 8) * D

    rows_cap = max(8, budget // (x_row_bytes + tab_row_bytes))
    # ~4 MiB of x read per step amortizes the ~0.35 us per-step overhead.
    rows_target = max(8, (4 * 1024 * 1024) // (D * x_itemsize))
    rows = int(min(rows_cap, rows_target))

    if S >= rows:
        TS = max(8, (rows // 8) * 8)     # multiple-of-8 seq tile
        TB = 1
    else:
        TS = S                           # full seq extent (legal full-dim block)
        TB = max(1, min(B, rows // max(S, 1)))

    # v7x has 2 TensorCores: make sure the "parallel" grid has >= 2 steps.
    if pl.cdiv(S, TS) * pl.cdiv(B, TB) < 2:
        if TB >= 2:
            TB = (TB + 1) // 2
        elif S >= 16:
            TS = max(8, ((pl.cdiv(S, 2) + 7) // 8) * 8)
    return TB, TS


def rope_forward(x: jax.Array, cos_i: jax.Array, sin_i: jax.Array) -> jax.Array:
    """Apply rotary embeddings. x: (batch, seq_len, dim).

    If RoPE is applied over all heads, keep dim = n_heads * head_dim fused in
    the lane axis (large multiple of 128) rather than calling per head."""
    B, S, D = x.shape
    L, Dt = cos_i.shape
    assert D % 2 == 0, "Dimension must be divisible by 2"
    assert Dt == D and sin_i.shape == (L, D), "table shape mismatch"
    assert S <= L, f"seq_len {S} exceeds max_seq_len {L} of the RoPE tables"

    # Mirrors `self.cos[:seq_len]` and makes any legal x seq tile also a legal
    # table block (full-extent or multiple of 8).
    cos_s = cos_i[:S]
    sin_s = sin_i[:S]

    x_item = jnp.dtype(x.dtype).itemsize
    t_item = jnp.dtype(cos_i.dtype).itemsize
    vmem_cap = _vmem_capacity_bytes()
    TB, TS = _pick_tiles(B, S, D, x_item, t_item, vmem_cap)

    # seq tiles outer, batch tiles inner: the cos/sin block index is constant
    # across the inner batch loop, so the table tile stays resident.
    grid = (pl.cdiv(S, TS), pl.cdiv(B, TB))

    cost = pl.CostEstimate(
        flops=3 * B * S * D,
        transcendentals=0,
        bytes_accessed=2 * B * S * D * x_item + 2 * S * D * t_item,
    )

    return pl.pallas_call(
        _rope_kernel,
        out_shape=jax.ShapeDtypeStruct((B, S, D), x.dtype),
        grid=grid,
        in_specs=[
            pl.BlockSpec((TB, TS, D), lambda s, b: (b, s, 0)),   # x  (lane-dense D)
            pl.BlockSpec((TS, D), lambda s, b: (s, 0)),          # cos (shared over b)
            pl.BlockSpec((TS, D), lambda s, b: (s, 0)),          # sin (shared over b)
        ],
        out_specs=pl.BlockSpec((TB, TS, D), lambda s, b: (b, s, 0)),
        compiler_params=pltpu.CompilerParams(
            dimension_semantics=("parallel", "parallel"),
            vmem_limit_bytes=int(min(96 * 1024 * 1024, (vmem_cap * 3) // 4)),
        ),
        cost_estimate=cost,
    )(x, cos_s, sin_s)


def rope_reference(x: jax.Array) -> jax.Array:
    """Pure-JAX re-implementation of the PyTorch RoPE.forward (ground truth)."""
    B, S, D = x.shape
    H = D // 2
    position = jnp.arange(S, dtype=jnp.float32)[:, None]
    div_term = jnp.exp(jnp.arange(0, D, 2, dtype=jnp.float32)
                       * (-math.log(10000.0) / D))
    pos_emb = position * div_term
    cos = jnp.cos(pos_emb)
    sin = jnp.sin(pos_emb)
    xr = x.astype(jnp.float32).reshape(B, S, H, 2)
    x1, x2 = xr[..., 0], xr[..., 1]
    o1 = x1 * cos - x2 * sin
    o2 = x1 * sin + x2 * cos
    return jnp.stack([o1, o2], axis=-1).reshape(B, S, D).astype(x.dtype)


if __name__ == "__main__":
    # Small but lane-dense demo shapes: D = 128 is a typical RoPE head dim.
    D, max_seq_len = 128, 64
    key = jax.random.PRNGKey(0)
    k1, k2 = jax.random.split(key)

    # Tables in the activation dtype (f32 here, matching x).
    cos_i, sin_i = make_rope_tables(D, max_seq_len, dtype=jnp.float32)

    # Case 1: S multiple of 8 -> grid split across batch (both v7x cores used).
    B, S = 2, 8
    x = jax.random.normal(k1, (B, S, D), dtype=jnp.float32)
    out = jax.block_until_ready(rope_forward(x, cos_i, sin_i))
    ref = rope_reference(x)
    assert out.shape == (B, S, D)
    assert jnp.allclose(out, ref, atol=1e-5, rtol=1e-5), "mismatch vs reference"

    # Case 2: ragged seq (S % 8 != 0) with batch folded into the block (TB > 1).
    B2, S2 = 4, 10
    x2 = jax.random.normal(k2, (B2, S2, D), dtype=jnp.float32)
    out2 = jax.block_until_ready(rope_forward(x2, cos_i, sin_i))
    ref2 = rope_reference(x2)
    assert out2.shape == (B2, S2, D)
    assert jnp.allclose(out2, ref2, atol=1e-5, rtol=1e-5), "mismatch vs reference"

    print("KERNEL_OK")
</pallas_src>

<mosaic_0001>
module attributes {stable_mosaic.version = 11 : i64} {
  func.func @_rope_kernel(%arg0: i32, %arg1: i32, %arg2: memref<1x8x128xf32, #tpu.memory_space<vmem>>, %arg3: memref<8x128xf32, #tpu.memory_space<vmem>>, %arg4: memref<8x128xf32, #tpu.memory_space<vmem>>, %arg5: memref<1x8x128xf32, #tpu.memory_space<vmem>>) attributes {dimension_semantics = [#tpu.dimension_semantics<parallel>, #tpu.dimension_semantics<parallel>], iteration_bounds = array<i64: 1, 2>, scalar_prefetch = 0 : i64, scratch_operands = 0 : i64, tpu.core_type = #tpu.core_type<tc>, window_params = [{transform_indices = @transform_0, window_bounds = array<i64: 1, 8, 128>}, {transform_indices = @transform_1, window_bounds = array<i64: 8, 128>}, {transform_indices = @transform_2, window_bounds = array<i64: 8, 128>}, {transform_indices = @transform_3, window_bounds = array<i64: 1, 8, 128>}]} {
    %c0 = arith.constant 0 : index
    %c0_0 = arith.constant 0 : index
    %c0_1 = arith.constant 0 : index
    %0 = vector.load %arg2[%c0, %c0_0, %c0_1] : memref<1x8x128xf32, #tpu.memory_space<vmem>>, vector<1x8x128xf32>
    %c0_2 = arith.constant 0 : index
    %c0_3 = arith.constant 0 : index
    %1 = vector.load %arg3[%c0_2, %c0_3] : memref<8x128xf32, #tpu.memory_space<vmem>>, vector<8x128xf32>
    %2 = vector.shape_cast %1 : vector<8x128xf32> to vector<1x8x128xf32>
    %c0_4 = arith.constant 0 : index
    %c0_5 = arith.constant 0 : index
    %3 = vector.load %arg4[%c0_4, %c0_5] : memref<8x128xf32, #tpu.memory_space<vmem>>, vector<8x128xf32>
    %4 = vector.shape_cast %3 : vector<8x128xf32> to vector<1x8x128xf32>
    %c1_i32 = arith.constant 1 : i32
    %5 = tpu.dynamic_rotate %0 by %c1_i32 dim 2 : vector<1x8x128xf32>, i32 -> vector<1x8x128xf32>
    %c127_i32 = arith.constant 127 : i32
    %6 = tpu.dynamic_rotate %0 by %c127_i32 dim 2 : vector<1x8x128xf32>, i32 -> vector<1x8x128xf32>
    %7 = tpu.iota {dimensions = array<i32: 2>} : vector<1x8x128xi32>
    %c2_i32 = arith.constant 2 : i32
    %c0_i32 = arith.constant 0 : i32
    %8 = arith.cmpi eq, %c2_i32, %c0_i32 : i32
    %c1_i32_6 = arith.constant 1 : i32
    %9 = arith.select %8, %c1_i32_6, %c2_i32 : i32
    %10 = vector.broadcast %9 : i32 to vector<1x8x128xi32>
    %11 = arith.remsi %7, %10 : vector<1x8x128xi32>
    %c0_i32_7 = arith.constant 0 : i32
    %12 = vector.broadcast %c0_i32_7 : i32 to vector<1x8x128xi32>
    %13 = arith.cmpi ne, %11, %12 : vector<1x8x128xi32>
    %c0_i32_8 = arith.constant 0 : i32
    %14 = vector.broadcast %c0_i32_8 : i32 to vector<1x8x128xi32>
    %15 = arith.cmpi slt, %11, %14 : vector<1x8x128xi32>
    %c0_i32_9 = arith.constant 0 : i32
    %16 = arith.cmpi slt, %9, %c0_i32_9 : i32
    %17 = vector.broadcast %16 : i1 to vector<1x8x128xi1>
    %18 = vector.broadcast %17 : vector<1x8x128xi1> to vector<1x8x128xi1>
    %19 = arith.xori %15, %18 : vector<1x8x128xi1>
    %20 = arith.andi %19, %13 : vector<1x8x128xi1>
    %21 = vector.broadcast %9 : i32 to vector<1x8x128xi32>
    %22 = arith.addi %11, %21 : vector<1x8x128xi32>
    %23 = arith.select %20, %22, %11 : vector<1x8x128xi1>, vector<1x8x128xi32>
    %c0_i32_10 = arith.constant 0 : i32
    %24 = vector.broadcast %c0_i32_10 : i32 to vector<1x8x128xi32>
    %25 = arith.cmpi eq, %23, %24 : vector<1x8x128xi32>
    %26 = arith.select %25, %6, %5 : vector<1x8x128xi1>, vector<1x8x128xf32>
    %27 = arith.mulf %0, %2 : vector<1x8x128xf32>
    %28 = arith.mulf %26, %4 : vector<1x8x128xf32>
    %29 = arith.addf %27, %28 : vector<1x8x128xf32>
    %c0_11 = arith.constant 0 : index
    %c0_12 = arith.constant 0 : index
    %c0_13 = arith.constant 0 : index
    %30 = vector.load %arg5[%c0_11, %c0_12, %c0_13] : memref<1x8x128xf32, #tpu.memory_space<vmem>>, vector<1x8x128xf32>
    tpu.vector_store %arg5[%c0_11, %c0_12, %c0_13], %29 {strides = array<i32>} : memref<1x8x128xf32, #tpu.memory_space<vmem>>, vector<1x8x128xf32>,
    return
  }
  func.func @transform_0(%arg0: i32, %arg1: i32) -> (i32, i32, i32) {
    %c0_i32 = arith.constant 0 : i32
    %c0_i32_0 = arith.constant 0 : i32
    return %arg1, %arg0, %c0_i32 : i32, i32, i32
  }
  func.func @transform_1(%arg0: i32, %arg1: i32) -> (i32, i32) {
    %c0_i32 = arith.constant 0 : i32
    %c0_i32_0 = arith.constant 0 : i32
    return %arg0, %c0_i32 : i32, i32
  }
  func.func @transform_2(%arg0: i32, %arg1: i32) -> (i32, i32) {
    %c0_i32 = arith.constant 0 : i32
    %c0_i32_0 = arith.constant 0 : i32
    return %arg0, %c0_i32 : i32, i32
  }
  func.func @transform_3(%arg0: i32, %arg1: i32) -> (i32, i32, i32) {
    %c0_i32 = arith.constant 0 : i32
    %c0_i32_0 = arith.constant 0 : i32
    return %arg1, %arg0, %c0_i32 : i32, i32, i32
  }
}

</mosaic_0001>

<llo_original>
// kernel: tpu_custom_call.1
$region0: #{tpu_custom_call.1}
  #allocation0 [shape = 'u32[]', space=smem, size = 0x4, offset = 0x4, fixed_abs, tag = 'smem constant byte address 0x4 - core index']
  #allocation1 [shape = 'u32[144,128]{1,0:T(1,128)}', space=vmem, size = 0x12000, scoped, tag = 'internal scratch']
  %s0 = inlined_call_operand.hbm [shape: f32[2,8,128], index: 0, kind: input, shape index: {}]
  %s1 = inlined_call_operand.hbm [shape: f32[8,128], index: 1, kind: input, shape index: {}]
  %s2 = inlined_call_operand.hbm [shape: f32[8,128], index: 2, kind: input, shape index: {}]
  %s3 = inlined_call_operand.hbm [shape: f32[2,8,128], index: 3, kind: output, shape index: {}]
  %s4 = sld [smem:[#allocation0]]
  $region57: #{tpu_custom_call.1} parent=0
    _
  %s6 = ssub.s32 1, %s4
  %s7 = scalar_select 0, %s6, %s4
  $region1: #{tpu_custom_call.1} parent=0
    #allocation2 [shape = 'u8[8192]{0}', space=vmem, size = 0x2000, scoped, tag = 'input window, operand 0']
    #allocation3 [shape = 's32[2]{0}', space=sflag, size = 0x8, scoped, tag = 'scoped memory for tpu_custom_call.1']
    #allocation4 [shape = 's32[2]{0}', space=sflag, size = 0x8, scoped, tag = 'scoped memory for tpu_custom_call.1']
    #allocation5 [shape = 'u8[4096]{0}', space=vmem, size = 0x1000, scoped, tag = 'input window, operand 1, single buffered']
    #allocation6 [shape = 's32[1]{0}', space=sflag, size = 0x4, scoped, tag = 'scoped memory for tpu_custom_call.1']
    #allocation7 [shape = 'u8[4096]{0}', space=vmem, size = 0x1000, scoped, tag = 'input window, operand 2, single buffered']
    #allocation8 [shape = 'u8[8192]{0}', space=vmem, size = 0x2000, scoped, tag = 'output window, operand 0']
    %8 = vsyncpa [#allocation3], 0
    %s9 = scalar_lea.sflag [#allocation3], 1
    %10 = vsyncpa %s9, 0
    %11 = vsyncpa [#allocation6], 0
    %12 = vsyncpa [#allocation4], 0
    %s13 = scalar_lea.sflag [#allocation4], 1
    %14 = vsyncpa %s13, 0
    loop: start=0, step=1, limit=4
    $region2: #{tpu_custom_call.1} parent=1 // loop_pre_header
      _
    $region3: #{tpu_custom_call.1} parent=1 // loop_header
      %s16 = sphi 0, %s20
      %p17 = scmp.ge.s32.totalorder %s16, 4
      %s23 = sphi 0, %s35
      %s24 = sphi 0, %s31
      %s25 = sphi 0, %s23
      %s26 = sphi 0, %s24
      %s27 = sphi 0, %s25
      %s28 = sphi 0, %s26
      %s40 = sphi 0, %s42
      %s43 = sphi 0, %s40
      %s44 = sphi 0, %s43
      %s60 = sphi 0, %s44
      %s66 = sphi 0, %s68
      %s69 = sphi 0, %s66
      %s70 = sphi 0, %s69
      %s86 = sphi 0, %s70
      %s92 = sphi 0, %s94
      %s95 = sphi 0, %s92
      %s96 = sphi 0, %s95
      %s112 = sphi 0, %s96
      %s120 = sphi 0, %s122
      %s123 = sphi 0, %s120
      %s124 = sphi 0, %s123
      %s140 = sphi 0, %s124
    $region4: #{tpu_custom_call.1} parent=1 // loop_header_branch
      %19 = sbr.rel (%p17) target = $region8
    $region5: #{tpu_custom_call.1} parent=1 // loop_body
      %s21 = ssub.s32 %s16, 1
      %s22 = ssub.s32 %s16, 2
      %s29 = sadd.s32 1, %s24
      %p30 = scmp.ge.s32.totalorder %s29, 2
      %s31 = scalar_select %p30, 0, %s29
      %s32 = sadd.s32 1, %s23
      %s33 = scalar_select %p30, %s32, %s23
      %p34 = scmp.ge.s32.totalorder %s33, 1
      %s35 = scalar_select %p34, 0, %s33
      %s36 = ssub.s32 %s24, %s31
      %s37 = ssub.s32 %s23, %s35
      %s38 = sor.u32 %s36, %s37
      %p39 = scmp.eq.s32.totalorder %s38, 0
      %s41 = sadd.s32 %s40, 1
      %s42 = scalar_select %p39, %s40, %s41
      %p45 = pneg %p39
      %p46 = scmp.eq.s32.totalorder %s16, 1
      %p47 = por %p45, %p46
      %p48 = scmp.ne.s32.totalorder %s40, %s43
      %p49 = scmp.eq.s32.totalorder %s16, 0
      %p50 = por %p48, %p49
      %p51 = scmp.ne.s32.totalorder %s40, %s43
      %p52 = scmp.eq.s32.totalorder %s21, 1
      %p53 = por %p51, %p52
      %p54 = scmp.ne.s32.totalorder %s43, %s44
      %p55 = scmp.eq.s32.totalorder %s21, 0
      %p56 = por %p54, %p55
      %p57 = scmp.ne.s32.totalorder %s43, %s44
      %p58 = scmp.eq.s32.totalorder %s22, 1
      %p59 = por %p57, %p58
      %p61 = scmp.ne.s32.totalorder %s44, %s60
      %p62 = scmp.eq.s32.totalorder %s22, 0
      %p63 = por %p61, %p62
      %s64 = ssub.s32 %s23, %s35
      %p65 = scmp.eq.s32.totalorder %s64, 0
      %s67 = sadd.s32 %s66, 1
      %s68 = scalar_select %p65, %s66, %s67
      %p71 = pneg %p65
      %p72 = scmp.eq.s32.totalorder %s16, 1
      %p73 = por %p71, %p72
      %p74 = scmp.ne.s32.totalorder %s66, %s69
      %p75 = scmp.eq.s32.totalorder %s16, 0
      %p76 = por %p74, %p75
      %p77 = scmp.ne.s32.totalorder %s66, %s69
      %p78 = scmp.eq.s32.totalorder %s21, 1
      %p79 = por %p77, %p78
      %p80 = scmp.ne.s32.totalorder %s69, %s70
      %p81 = scmp.eq.s32.totalorder %s21, 0
      %p82 = por %p80, %p81
      %p83 = scmp.ne.s32.totalorder %s69, %s70
      %p84 = scmp.eq.s32.totalorder %s22, 1
      %p85 = por %p83, %p84
      %p87 = scmp.ne.s32.totalorder %s70, %s86
      %p88 = scmp.eq.s32.totalorder %s22, 0
      %p89 = por %p87, %p88
      %s90 = ssub.s32 %s23, %s35
      %p91 = scmp.eq.s32.totalorder %s90, 0
      %s93 = sadd.s32 %s92, 1
      %s94 = scalar_select %p91, %s92, %s93
      %p97 = pneg %p91
      %p98 = scmp.eq.s32.totalorder %s16, 1
      %p99 = por %p97, %p98
      %p100 = scmp.ne.s32.totalorder %s92, %s95
      %p101 = scmp.eq.s32.totalorder %s16, 0
      %p102 = por %p100, %p101
      %p103 = scmp.ne.s32.totalorder %s92, %s95
      %p104 = scmp.eq.s32.totalorder %s21, 1
      %p105 = por %p103, %p104
      %p106 = scmp.ne.s32.totalorder %s95, %s96
      %p107 = scmp.eq.s32.totalorder %s21, 0
      %p108 = por %p106, %p107
      %p109 = scmp.ne.s32.totalorder %s95, %s96
      %p110 = scmp.eq.s32.totalorder %s22, 1
      %p111 = por %p109, %p110
      %p113 = scmp.ne.s32.totalorder %s96, %s112
      %p114 = scmp.eq.s32.totalorder %s22, 0
      %p115 = por %p113, %p114
      %s116 = ssub.s32 %s24, %s31
      %s117 = ssub.s32 %s23, %s35
      %s118 = sor.u32 %s116, %s117
      %p119 = scmp.eq.s32.totalorder %s118, 0
      %s121 = sadd.s32 %s120, 1
      %s122 = scalar_select %p119, %s120, %s121
      %p125 = pneg %p119
      %p126 = scmp.eq.s32.totalorder %s16, 1
      %p127 = por %p125, %p126
      %p128 = scmp.ne.s32.totalorder %s120, %s123
      %p129 = scmp.eq.s32.totalorder %s16, 0
      %p130 = por %p128, %p129
      %p131 = scmp.ne.s32.totalorder %s120, %s123
      %p132 = scmp.eq.s32.totalorder %s21, 1
      %p133 = por %p131, %p132
      %p134 = scmp.ne.s32.totalorder %s123, %s124
      %p135 = scmp.eq.s32.totalorder %s21, 0
      %p136 = por %p134, %p135
      %p137 = scmp.ne.s32.totalorder %s123, %s124
      %p138 = scmp.eq.s32.totalorder %s22, 1
      %p139 = por %p137, %p138
      %p141 = scmp.ne.s32.totalorder %s124, %s140
      %p142 = scmp.eq.s32.totalorder %s22, 0
      %p143 = por %p141, %p142
      %p144 = scmp.le.s32.totalorder 1, %s16
      %p145 = scmp.lt.s32.totalorder %s16, 3
      %p146 = pnand %p144, %p145
      %p147 = pneg %p146
      // Predicated region
      $region9: #{tpu_custom_call.1} parent=5 // pred_check
        _
      $region10: #{tpu_custom_call.1} parent=5 // pred_check_branch
        %149 = sbr.rel (%p146) target = $region12
      $region11: #{tpu_custom_call.1} parent=5 // pred_region
        %s150 = ssub.s32 %s16, 1
        // Predicated region
        $region13: #{tpu_custom_call.1} parent=11 // pred_check
          %p151 = pneg %p82
        $region14: #{tpu_custom_call.1} parent=11 // pred_check_branch
          %153 = sbr.rel (%p151) target = $region16
        $region15: #{tpu_custom_call.1} parent=11 // pred_region
          %s155 = ssub.s32 128, 128
          %156 = vsyncadd [#allocation6], %s155
          %s157 = smul.addr %s25, 128
          %s158 = scalar_lea.hbm %s1, %s157
          %s160 = sshll.u32 [#allocation5], 4
          %s161 = int_to_ptr.vmem [resolvable:$true] %s160
          %163 = dma.hbm_to_vmem [thread:$0]  %s158, 128, %s161, [#allocation6]
        $region16: #{tpu_custom_call.1} parent=11 // pred_fallthru
          _
        // Predicated region
        $region17: #{tpu_custom_call.1} parent=11 // pred_check
          %p164 = pneg %p108
        $region18: #{tpu_custom_call.1} parent=11 // pred_check_branch
          %166 = sbr.rel (%p164) target = $region20
        $region19: #{tpu_custom_call.1} parent=11 // pred_region
          %s168 = ssub.s32 128, 128
          %169 = vsyncadd [#allocation6], %s168
          %s170 = smul.addr %s25, 128
          %s171 = scalar_lea.hbm %s2, %s170
          %s173 = sshll.u32 [#allocation7], 4
          %s174 = int_to_ptr.vmem [resolvable:$true] %s173
          %176 = dma.hbm_to_vmem [thread:$0]  %s171, 128, %s174, [#allocation6]
        $region20: #{tpu_custom_call.1} parent=11 // pred_fallthru
          _
      $region12: #{tpu_custom_call.1} parent=5 // pred_fallthru
        _
      %p177 = scmp.lt.s32.totalorder %s16, 2
      // Predicated region
      $region21: #{tpu_custom_call.1} parent=5 // pred_check
        %p178 = pneg %p177
      $region22: #{tpu_custom_call.1} parent=5 // pred_check_branch
        %180 = sbr.rel (%p178) target = $region24
      $region23: #{tpu_custom_call.1} parent=5 // pred_region
        // Predicated region
        $region25: #{tpu_custom_call.1} parent=23 // pred_check
          %p181 = pneg %p50
        $region26: #{tpu_custom_call.1} parent=23 // pred_check_branch
          %183 = sbr.rel (%p181) target = $region28
        $region27: #{tpu_custom_call.1} parent=23 // pred_region
          %s184 = sand.u32 %s40, 1
          %s185 = scalar_lea.sflag [#allocation3], %s184
          %s186 = sand.u32 %s40, 1
          %s187 = smul.addr %s186, 8
          %s188 = scalar_lea.vmem [#allocation2], %s187
          %s190 = ssub.s32 128, 128
          %191 = vsyncadd %s185, %s190
          %s192 = sadd.s32 %s23, %s24
          %s193 = smul.addr %s192, 128
          %s194 = scalar_lea.hbm %s0, %s193
          %s196 = sshll.u32 %s188, 4
          %s197 = int_to_ptr.vmem [resolvable:$true] %s196
          %199 = dma.hbm_to_vmem [thread:$0]  %s194, 128, %s197, %s185
        $region28: #{tpu_custom_call.1} parent=23 // pred_fallthru
          _
      $region24: #{tpu_custom_call.1} parent=5 // pred_fallthru
        _
      %p200 = scmp.le.s32.totalorder 1, %s16
      %p201 = scmp.lt.s32.totalorder %s16, 3
      %p202 = pnand %p200, %p201
      %p203 = pneg %p202
      // Predicated region
      $region29: #{tpu_custom_call.1} parent=5 // pred_check
        _
      $region30: #{tpu_custom_call.1} parent=5 // pred_check_branch
        %205 = sbr.rel (%p202) target = $region32
      $region31: #{tpu_custom_call.1} parent=5 // pred_region
        %s206 = ssub.s32 %s16, 1
        %s207 = sand.u32 %s43, 1
        %s208 = scalar_lea.sflag [#allocation3], %s207
        %s209 = sand.u32 %s43, 1
        %s210 = smul.addr %s209, 8
        %s211 = scalar_lea.vmem [#allocation2], %s210
        // Predicated region
        $region33: #{tpu_custom_call.1} parent=31 // pred_check
          %p212 = pneg %p56
        $region34: #{tpu_custom_call.1} parent=31 // pred_check_branch
          %214 = sbr.rel (%p212) target = $region36
        $region35: #{tpu_custom_call.1} parent=31 // pred_region
          %215 = dma.done %s208, 128
        $region36: #{tpu_custom_call.1} parent=31 // pred_fallthru
          _
        // Predicated region
        $region37: #{tpu_custom_call.1} parent=31 // pred_check
          %p216 = pneg %p82
        $region38: #{tpu_custom_call.1} parent=31 // pred_check_branch
          %218 = sbr.rel (%p216) target = $region40
        $region39: #{tpu_custom_call.1} parent=31 // pred_region
          %219 = dma.done [#allocation6], 128
        $region40: #{tpu_custom_call.1} parent=31 // pred_fallthru
          _
        // Predicated region
        $region41: #{tpu_custom_call.1} parent=31 // pred_check
          %p220 = pneg %p108
        $region42: #{tpu_custom_call.1} parent=31 // pred_check_branch
          %222 = sbr.rel (%p220) target = $region44
        $region43: #{tpu_custom_call.1} parent=31 // pred_region
          %223 = dma.done [#allocation6], 128
        $region44: #{tpu_custom_call.1} parent=31 // pred_fallthru
          _
        %s224 = sand.u32 %s43, 1
        %s225 = scalar_lea.sflag [#allocation3], %s224
        %s226 = sand.u32 %s43, 1
        %s227 = smul.addr %s226, 8
        %s228 = scalar_lea.vmem [#allocation2], %s227
        %p229 = pneg %p56
        %p230 = pneg %p53
        %p231 = pneg %p82
        %p232 = pneg %p79
        %p233 = pneg %p108
        %p234 = pneg %p105
        %p235 = pneg %p136
        %p236 = pneg %p133
        %s237 = sand.u32 %s123, 1
        %s238 = scalar_lea.sflag [#allocation4], %s237
        %s239 = sand.u32 %s123, 1
        %s240 = smul.addr %s239, 8
        %s241 = scalar_lea.vmem [#allocation8], %s240
        %v242 = vld [vmem:[%s211] sm:$0xff]
        %v243 = vld [vmem:[#allocation5] sm:$0xff]
        %v244 = vld [vmem:[#allocation7] sm:$0xff]
        %245 = vrot.lane.b32.xlu0 %v242, 1
        %v246 = vpop.permute.xlu0 %245
        %247 = vrot.lane.b32.xlu0 %v242, 127
        %v248 = vpop.permute.xlu0 %247
        %v249 = vlaneseq
        %v250 = vand.u32 %v249, 127
        %vm251 = vcmp.lt.s32.totalorder %v250, 0
        %v252 = vsub.s32 0, %v250
        %v253 = vsel %vm251, %v252, %v250
        %v254 = vshrl.u32 %v253, 1
        %v255 = vand.u32 %v253, 1
        %v256 = vsub.s32 0, %v255
        %v257 = vsel %vm251, %v256, %v255
        %vm258 = vcmp.ne.s32.totalorder %v257, 0
        %vm259 = vcmp.lt.s32.totalorder %v257, 0
        %vm260 = vmand %vm259, %vm258
        %v261 = vadd.s32 %v257, 2
        %v262 = vsel %vm260, %v261, %v257
        %vm263 = vcmp.eq.s32.totalorder %v262, 0
        %v264 = vsel %vm263, %v248, %v246
        %v265 = vmul.f32 %v242, %v243
        %v266 = vmul.f32 %v264, %v244
        %v267 = vadd.f32 %v265, %v266
        %268 = vst [vmem:[%s241] sm:$0xff] %v267
        %s269 = sand.u32 %s123, 1
        %s270 = scalar_lea.sflag [#allocation4], %s269
        %s271 = sand.u32 %s123, 1
        %s272 = smul.addr %s271, 8
        %s273 = scalar_lea.vmem [#allocation8], %s272
        // Predicated region
        $region45: #{tpu_custom_call.1} parent=31 // pred_check
          %p274 = pneg %p133
        $region46: #{tpu_custom_call.1} parent=31 // pred_check_branch
          %276 = sbr.rel (%p274) target = $region48
        $region47: #{tpu_custom_call.1} parent=31 // pred_region
          %s278 = ssub.s32 128, 128
          %279 = vsyncadd %s270, %s278
          %s280 = sadd.s32 %s25, %s26
          %s281 = smul.addr %s280, 128
          %s282 = scalar_lea.hbm %s3, %s281
          %s284 = sshll.u32 %s273, 4
          %s285 = int_to_ptr.vmem [resolvable:$true] %s284
          %287 = dma.vmem_to_hbm [thread:$0]  %s285, 128, %s282, %s270
        $region48: #{tpu_custom_call.1} parent=31 // pred_fallthru
          _
      $region32: #{tpu_custom_call.1} parent=5 // pred_fallthru
        _
      %p288 = scmp.le.s32.totalorder 2, %s16
      // Predicated region
      $region49: #{tpu_custom_call.1} parent=5 // pred_check
        %p289 = pneg %p288
      $region50: #{tpu_custom_call.1} parent=5 // pred_check_branch
        %291 = sbr.rel (%p289) target = $region52
      $region51: #{tpu_custom_call.1} parent=5 // pred_region
        %s292 = ssub.s32 %s16, 2
        // Predicated region
        $region53: #{tpu_custom_call.1} parent=51 // pred_check
          %p293 = pneg %p139
        $region54: #{tpu_custom_call.1} parent=51 // pred_check_branch
          %295 = sbr.rel (%p293) target = $region56
        $region55: #{tpu_custom_call.1} parent=51 // pred_region
          %s296 = sand.u32 %s124, 1
          %s297 = scalar_lea.sflag [#allocation4], %s296
          %s298 = sand.u32 %s124, 1
          %s299 = smul.addr %s298, 8
          %s300 = scalar_lea.vmem [#allocation8], %s299
          %301 = dma.done %s297, 128
        $region56: #{tpu_custom_call.1} parent=51 // pred_fallthru
          _
      $region52: #{tpu_custom_call.1} parent=5 // pred_fallthru
        _
    $region6: #{tpu_custom_call.1} parent=1 // loop_footer
      %s20 = sadd.s32 1, %s16
    $region7: #{tpu_custom_call.1} parent=1 // loop_footer_branch
      %15 = sbr.rel target = $region3
    $region8: #{tpu_custom_call.1} parent=1 // loop_exit
      _
    %302 = vsyncpa [#allocation3], 1
    %s303 = scalar_lea.sflag [#allocation3], 1
    %304 = vsyncpa %s303, 1
    %305 = vsyncpa [#allocation6], 1
    %306 = vsyncpa [#allocation4], 1
    %s307 = scalar_lea.sflag [#allocation4], 1
    %308 = vsyncpa %s307, 1

</llo_original>
